<compile_context>
chip_gen: v7x
topology: tpu7x:2x2x1
jax: 0.10.0
libtpu: 0.0.40
codegen_flags: <defaults>
</compile_context>

<pallas_src>
import functools
import math

import numpy as np
import jax
import jax.numpy as jnp
from jax import lax
from jax.experimental import pallas as pl
from jax.experimental.pallas import tpu as pltpu

# Gaussian taps from EdgeLoss.__init__ (composed matrices are built in float64
# on the host and cast to float32 once).
_K1D = np.array([0.05, 0.25, 0.4, 0.25, 0.05], dtype=np.float64)
_K2D = np.outer(_K1D, _K1D).astype(np.float32)  # (5,5) for the pure-JAX reference


def _gauss_matrix(n: int) -> np.ndarray:
    """1-D 5-tap gaussian blur with replicate padding as an (n, n) matrix."""
    m = np.zeros((n, n), dtype=np.float64)
    for r in range(n):
        for i in range(5):
            src = min(max(r + i - 2, 0), n - 1)
            m[r, src] += _K1D[i]
    return m


def _composed_blur_matrices(H: int, W: int):
    """lap(d) = d - Ac @ d @ Wc  (mask*4 and both gauss passes folded in)."""
    A = _gauss_matrix(H)            # row blur (applied on the left)
    Bt = _gauss_matrix(W).T         # column blur in right-multiply form
    r = np.diag((np.arange(H) % 2 == 0).astype(np.float64))   # keep even rows
    c = np.diag((np.arange(W) % 2 == 0).astype(np.float64))   # keep even cols
    Ac = 4.0 * (A @ r @ A)          # (H, H)
    Wc = Bt @ c @ Bt                # (W, W)
    return Ac, Wc


def _choose_planes_per_block(NC: int, H: int, W: int) -> int:
    """Planes per grid step. P*W is the lane width of every block; keep it a
    multiple of 128 (unmasked stores / aligned vregs) and keep the block plus
    kron(I_P, Wc) comfortably inside scoped VMEM."""
    lane_unit = 128 // math.gcd(W, 128)            # smallest P with P*W % 128 == 0
    # Target ~256 lanes per block (full v6e/v7x MXU width) while bounding the
    # flop overhead of the block-diagonal column-blur matmul.
    p_target = lane_unit * max(1, math.ceil(256 / (lane_unit * W)))

    def fits(p):
        return (H * p * W * 4 <= (2 << 20)) and ((p * W) ** 2 * 4 <= (4 << 20))

    # Round NC up to a lane-dense multiple so a single block stays 128-aligned.
    nc_round = ((NC + lane_unit - 1) // lane_unit) * lane_unit
    if nc_round <= p_target and fits(nc_round):
        return nc_round                             # one block covers everything
    if fits(p_target):
        return p_target
    # TODO(synk): very large planes (H, W >~ 512) should use a halo-tiled /
    # pltpu.roll-based separable blur instead of dense blur matrices.
    return lane_unit


def _edge_loss_kernel(x_ref, y_ref, ac_ref, bd_ref, out_ref, *, H, PW):
    # d = x - y for P planes laid side by side along lanes: shape (H, P*W).
    d = x_ref[...] - y_ref[...]
    # Composed laplacian operator: lap(d) = d - Ac @ d @ kron(I_P, Wc).
    # DEFAULT precision (bf16 MXU passes), f32 accumulation.
    g = jnp.dot(ac_ref[...], d, preferred_element_type=jnp.float32)
    g = jnp.dot(g, bd_ref[...], preferred_element_type=jnp.float32)
    a = jnp.abs(d - g)                              # |lap(x) - lap(y)| for this block
    # Fold H rows down to 8 sublane rows with tile-aligned VPU adds; the full
    # cross-lane reduction is deferred to the wrapper (done once, not per step).
    if H % 8 == 0:
        part = a[0:8, :]
        for r in range(8, H, 8):
            part = part + a[r:r + 8, :]
    else:
        s = jnp.sum(a, axis=0, keepdims=True)       # (1, PW)
        part = jnp.concatenate([s, jnp.zeros((7, PW), jnp.float32)], axis=0)
    out_ref[0] = part                               # per-block partial sums (8, PW)


def edge_loss(x, y, loss_weight=1.0):
    """x, y: (N, C, H, W) -> scalar float32 loss (matches basicsr EdgeLoss.forward)."""
    N, C, H, W = x.shape
    NC = N * C
    P = _choose_planes_per_block(NC, H, W)
    NCpad = ((NC + P - 1) // P) * P
    PW = P * W
    num_blocks = NCpad // P

    xf = x.reshape(NC, H, W).astype(jnp.float32)
    yf = y.reshape(NC, H, W).astype(jnp.float32)
    if NCpad != NC:
        # Zero planes have lap == 0 and contribute nothing to the L1 sum -> exact.
        pad = ((0, NCpad - NC), (0, 0), (0, 0))
        xf = jnp.pad(xf, pad)
        yf = jnp.pad(yf, pad)

    # Lane-dense layout: (H, NCpad*W), planes concatenated along the lane axis.
    # (Layout plumbing done once in the wrapper; the kernel never relayouts.)
    xt = jnp.transpose(xf, (1, 0, 2)).reshape(H, NCpad * W)
    yt = jnp.transpose(yf, (1, 0, 2)).reshape(H, NCpad * W)

    Ac_np, Wc_np = _composed_blur_matrices(H, W)
    Ac = jnp.asarray(Ac_np.astype(np.float32))                                       # (H, H)
    BD = jnp.asarray(np.kron(np.eye(P, dtype=np.float64), Wc_np).astype(np.float32))  # (PW, PW)

    kern = functools.partial(_edge_loss_kernel, H=H, PW=PW)

    partials = pl.pallas_call(
        kern,
        out_shape=jax.ShapeDtypeStruct((num_blocks, 8, PW), jnp.float32),
        grid_spec=pltpu.PrefetchScalarGridSpec(
            num_scalar_prefetch=0,
            grid=(num_blocks,),
            in_specs=[
                pl.BlockSpec((H, PW), lambda i: (0, i)),
                pl.BlockSpec((H, PW), lambda i: (0, i)),
                pl.BlockSpec((H, H), lambda i: (0, 0)),     # constant block: no re-DMA
                pl.BlockSpec((PW, PW), lambda i: (0, 0)),    # constant block: no re-DMA
            ],
            out_specs=pl.BlockSpec((1, 8, PW), lambda i: (i, 0, 0)),
        ),
        compiler_params=pltpu.CompilerParams(
            # Each step writes its own output block -> safe to shard across
            # TensorCores (2x on v7x; no effect on single-TC v5e/v6e).
            dimension_semantics=("parallel",),
            # Headroom for double-buffered input blocks + Ac/BD when P is large
            # (safe on all generations: v7x physical VMEM is 64 MiB).
            vmem_limit_bytes=32 * 1024 * 1024,
        ),
    )(xt, yt, Ac, BD)

    # Single cross-lane reduction + mean scaling, once, outside the grid loop.
    return jnp.sum(partials) * (float(loss_weight) / float(N * C * H * W))


# ---------------- pure-JAX reference (matches the PyTorch module) ----------------

def _ref_conv_gauss(img):
    C = img.shape[1]
    k = jnp.tile(jnp.asarray(_K2D)[None, None, :, :], (C, 1, 1, 1))  # (C,1,5,5)
    imgp = jnp.pad(img, ((0, 0), (0, 0), (2, 2), (2, 2)), mode='edge')
    return lax.conv_general_dilated(
        imgp, k, window_strides=(1, 1), padding='VALID',
        dimension_numbers=('NCHW', 'OIHW', 'NCHW'), feature_group_count=C,
        precision=lax.Precision.HIGHEST)


def _ref_laplacian(cur):
    f = _ref_conv_gauss(cur)
    nf = jnp.zeros_like(f).at[:, :, ::2, ::2].set(f[:, :, ::2, ::2] * 4.0)
    return cur - _ref_conv_gauss(nf)


def _ref_edge_loss(x, y, loss_weight=1.0):
    return jnp.mean(jnp.abs(_ref_laplacian(x) - _ref_laplacian(y))) * loss_weight


if __name__ == "__main__":
    key = jax.random.PRNGKey(0)
    kx, ky = jax.random.split(key)
    # EdgeLoss's gaussian kernel is built for 3 channels (groups=3).
    shape = (2, 3, 16, 16)  # N, C, H, W
    x = jax.random.uniform(kx, shape, dtype=jnp.float32)
    y = jax.random.uniform(ky, shape, dtype=jnp.float32)

    loss = jax.block_until_ready(edge_loss(x, y, loss_weight=1.0))
    ref = jax.block_until_ready(_ref_edge_loss(x, y, loss_weight=1.0))
    # Kernel matmuls use DEFAULT precision (single-pass bf16 MXU, f32 accumulate);
    # tolerance sized for that (structural bugs are >>1e-2).
    assert np.allclose(np.asarray(loss), np.asarray(ref), rtol=5e-3, atol=1e-4), (loss, ref)
    print("KERNEL_OK")
</pallas_src>

<mosaic_0001>
module attributes {stable_mosaic.version = 11 : i64} {
  func.func @_edge_loss_kernel(%arg0: i32, %arg1: memref<16x128xf32, #tpu.memory_space<vmem>>, %arg2: memref<16x128xf32, #tpu.memory_space<vmem>>, %arg3: memref<16x16xf32, #tpu.memory_space<vmem>>, %arg4: memref<128x128xf32, #tpu.memory_space<vmem>>, %arg5: memref<1x8x128xf32, #tpu.memory_space<vmem>>) attributes {dimension_semantics = [#tpu.dimension_semantics<parallel>], iteration_bounds = array<i64: 1>, scalar_prefetch = 0 : i64, scratch_operands = 0 : i64, tpu.core_type = #tpu.core_type<tc>, window_params = [{transform_indices = @transform_0, window_bounds = array<i64: 16, 128>}, {transform_indices = @transform_1, window_bounds = array<i64: 16, 128>}, {pipeline_mode = #tpu.pipeline_mode<synchronous>, transform_indices = @transform_2, window_bounds = array<i64: 16, 16>}, {pipeline_mode = #tpu.pipeline_mode<synchronous>, transform_indices = @transform_3, window_bounds = array<i64: 128, 128>}, {transform_indices = @transform_4, window_bounds = array<i64: 1, 8, 128>}]} {
    %c0 = arith.constant 0 : index
    %c0_0 = arith.constant 0 : index
    %0 = vector.load %arg1[%c0, %c0_0] : memref<16x128xf32, #tpu.memory_space<vmem>>, vector<16x128xf32>
    %c0_1 = arith.constant 0 : index
    %c0_2 = arith.constant 0 : index
    %1 = vector.load %arg2[%c0_1, %c0_2] : memref<16x128xf32, #tpu.memory_space<vmem>>, vector<16x128xf32>
    %2 = arith.subf %0, %1 : vector<16x128xf32>
    %c0_3 = arith.constant 0 : index
    %c0_4 = arith.constant 0 : index
    %3 = vector.load %arg3[%c0_3, %c0_4] : memref<16x16xf32, #tpu.memory_space<vmem>>, vector<16x16xf32>
    %cst = arith.constant dense<0.000000e+00> : vector<16x128xf32>
    %4 = tpu.matmul %3, %2, %cst {dimension_numbers = #tpu.dot_dimension_numbers<[1], [0], [0], [1], [0, 0, 1, 1], [], []>} : vector<16x16xf32>, vector<16x128xf32>, vector<16x128xf32> -> vector<16x128xf32>
    %c0_5 = arith.constant 0 : index
    %c0_6 = arith.constant 0 : index
    %5 = vector.load %arg4[%c0_5, %c0_6] : memref<128x128xf32, #tpu.memory_space<vmem>>, vector<128x128xf32>
    %cst_7 = arith.constant dense<0.000000e+00> : vector<16x128xf32>
    %6 = tpu.matmul %4, %5, %cst_7 {dimension_numbers = #tpu.dot_dimension_numbers<[1], [0], [0], [1], [0, 0, 1, 1], [], []>} : vector<16x128xf32>, vector<128x128xf32>, vector<16x128xf32> -> vector<16x128xf32>
    %7 = arith.subf %2, %6 : vector<16x128xf32>
    %8 = math.absf %7 : vector<16x128xf32>
    %9 = vector.extract_strided_slice %8 {offsets = [0, 0], sizes = [8, 128], strides = [1, 1]} : vector<16x128xf32> to vector<8x128xf32>
    %10 = vector.extract_strided_slice %8 {offsets = [8, 0], sizes = [8, 128], strides = [1, 1]} : vector<16x128xf32> to vector<8x128xf32>
    %11 = arith.addf %9, %10 : vector<8x128xf32>
    %c0_8 = arith.constant 0 : index
    %c0_9 = arith.constant 0 : index
    %c0_10 = arith.constant 0 : index
    %12 = vector.load %arg5[%c0_8, %c0_9, %c0_10] : memref<1x8x128xf32, #tpu.memory_space<vmem>>, vector<1x8x128xf32>
    %13 = vector.shape_cast %12 : vector<1x8x128xf32> to vector<8x128xf32>
    %14 = vector.shape_cast %11 : vector<8x128xf32> to vector<1x8x128xf32>
    tpu.vector_store %arg5[%c0_8, %c0_9, %c0_10], %14 {strides = array<i32>} : memref<1x8x128xf32, #tpu.memory_space<vmem>>, vector<1x8x128xf32>,
    return
  }
  func.func @transform_0(%arg0: i32) -> (i32, i32) {
    %c0_i32 = arith.constant 0 : i32
    %c0_i32_0 = arith.constant 0 : i32
    return %c0_i32, %arg0 : i32, i32
  }
  func.func @transform_1(%arg0: i32) -> (i32, i32) {
    %c0_i32 = arith.constant 0 : i32
    %c0_i32_0 = arith.constant 0 : i32
    return %c0_i32, %arg0 : i32, i32
  }
  func.func @transform_2(%arg0: i32) -> (i32, i32) {
    %c0_i32 = arith.constant 0 : i32
    %c0_i32_0 = arith.constant 0 : i32
    %c0_i32_1 = arith.constant 0 : i32
    return %c0_i32, %c0_i32_0 : i32, i32
  }
  func.func @transform_3(%arg0: i32) -> (i32, i32) {
    %c0_i32 = arith.constant 0 : i32
    %c0_i32_0 = arith.constant 0 : i32
    %c0_i32_1 = arith.constant 0 : i32
    return %c0_i32, %c0_i32_0 : i32, i32
  }
  func.func @transform_4(%arg0: i32) -> (i32, i32, i32) {
    %c0_i32 = arith.constant 0 : i32
    %c0_i32_0 = arith.constant 0 : i32
    %c0_i32_1 = arith.constant 0 : i32
    return %arg0, %c0_i32, %c0_i32_0 : i32, i32, i32
  }
}

</mosaic_0001>

<llo_original>
// kernel: tpu_custom_call.1
$region0: #{tpu_custom_call.1}
  #allocation0 [shape = 'u32[]', space=smem, size = 0x4, offset = 0x4, fixed_abs, tag = 'smem constant byte address 0x4 - core index']
  #allocation1 [shape = 'u32[144,128]{1,0:T(1,128)}', space=vmem, size = 0x12000, scoped, tag = 'internal scratch']
  %s0 = inlined_call_operand.hbm [shape: f32[16,128], index: 0, kind: input, shape index: {}]
  %s1 = inlined_call_operand.hbm [shape: f32[16,128], index: 1, kind: input, shape index: {}]
  %s2 = inlined_call_operand.hbm [shape: f32[16,16], index: 2, kind: input, shape index: {}]
  %s3 = inlined_call_operand.hbm [shape: f32[128,128], index: 3, kind: input, shape index: {}]
  %s4 = inlined_call_operand.hbm [shape: f32[1,8,128], index: 4, kind: output, shape index: {}]
  %s5 = sld [smem:[#allocation0]]
  $region42: #{tpu_custom_call.1} parent=0
    _
  %s7 = ssub.s32 1, %s5
  %s8 = scalar_select 0, %s7, %s5
  $region1: #{tpu_custom_call.1} parent=0
    #allocation2 [shape = 'u8[8192]{0}', space=vmem, size = 0x2000, scoped, tag = 'input window, operand 0, single buffered']
    #allocation3 [shape = 's32[1]{0}', space=sflag, size = 0x4, scoped, tag = 'scoped memory for tpu_custom_call.1']
    #allocation4 [shape = 's32[1]{0}', space=sflag, size = 0x4, scoped, tag = 'scoped memory for tpu_custom_call.1']
    #allocation5 [shape = 'u8[8192]{0}', space=vmem, size = 0x2000, scoped, tag = 'input window, operand 1, single buffered']
    #allocation6 [shape = 's32[1]{0}', space=sflag, size = 0x4, scoped, tag = 'scoped memory for tpu_custom_call.1']
    #allocation7 [shape = 'u8[8192]{0}', space=vmem, size = 0x2000, scoped, tag = 'input window, operand 2, single buffered']
    #allocation8 [shape = 'u8[65536]{0}', space=vmem, size = 0x10000, scoped, tag = 'input window, operand 3, single buffered']
    #allocation9 [shape = 's32[1]{0}', space=sflag, size = 0x4, scoped, tag = 'scoped memory for tpu_custom_call.1']
    #allocation10 [shape = 'u8[4096]{0}', space=vmem, size = 0x1000, scoped, tag = 'output window, operand 0, single buffered']
    %9 = vsyncpa [#allocation3], 0
    %10 = vsyncpa [#allocation6], 0
    %11 = vsyncpa [#allocation9], 0
    %12 = vsyncpa [#allocation4], 0
    // Predicated region
    $region2: #{tpu_custom_call.1} parent=1 // pred_check
      _
    $region3: #{tpu_custom_call.1} parent=1 // pred_check_branch
      %14 = sbr.rel (0) target = $region5
    $region4: #{tpu_custom_call.1} parent=1 // pred_region
      %s16 = ssub.s32 256, 256
      %17 = vsyncadd [#allocation3], %s16
      %s18 = sshll.u32 [#allocation2], 4
      %s19 = int_to_ptr.vmem [resolvable:$true] %s18
      %24 = dma.hbm_to_vmem [thread:$0]  %s0, 256, %s19, [#allocation3], 128, 128, 8
    $region5: #{tpu_custom_call.1} parent=1 // pred_fallthru
      _
    // Predicated region
    $region6: #{tpu_custom_call.1} parent=1 // pred_check
      _
    $region7: #{tpu_custom_call.1} parent=1 // pred_check_branch
      %26 = sbr.rel (0) target = $region9
    $region8: #{tpu_custom_call.1} parent=1 // pred_region
      %s28 = ssub.s32 256, 256
      %29 = vsyncadd [#allocation6], %s28
      %s30 = sshll.u32 [#allocation5], 4
      %s31 = int_to_ptr.vmem [resolvable:$true] %s30
      %36 = dma.hbm_to_vmem [thread:$0]  %s1, 256, %s31, [#allocation6], 128, 128, 8
    $region9: #{tpu_custom_call.1} parent=1 // pred_fallthru
      _
    // Predicated region
    $region10: #{tpu_custom_call.1} parent=1 // pred_check
      _
    $region11: #{tpu_custom_call.1} parent=1 // pred_check_branch
      %38 = sbr.rel (0) target = $region13
    $region12: #{tpu_custom_call.1} parent=1 // pred_region
      %s40 = ssub.s32 256, 256
      %41 = vsyncadd [#allocation6], %s40
      %s42 = sshll.u32 [#allocation7], 4
      %s43 = int_to_ptr.vmem [resolvable:$true] %s42
      %48 = dma.hbm_to_vmem [thread:$0]  %s2, 256, %s43, [#allocation6], 128, 128, 8
    $region13: #{tpu_custom_call.1} parent=1 // pred_fallthru
      _
    // Predicated region
    $region14: #{tpu_custom_call.1} parent=1 // pred_check
      _
    $region15: #{tpu_custom_call.1} parent=1 // pred_check_branch
      %50 = sbr.rel (0) target = $region17
    $region16: #{tpu_custom_call.1} parent=1 // pred_region
      %s52 = ssub.s32 2048, 2048
      %53 = vsyncadd [#allocation9], %s52
      %s54 = sshll.u32 [#allocation8], 4
      %s55 = int_to_ptr.vmem [resolvable:$true] %s54
      %60 = dma.hbm_to_vmem [thread:$0]  %s3, 2048, %s55, [#allocation9], 128, 128, 8
    $region17: #{tpu_custom_call.1} parent=1 // pred_fallthru
      _
    // Predicated region
    $region18: #{tpu_custom_call.1} parent=1 // pred_check
      _
    $region19: #{tpu_custom_call.1} parent=1 // pred_check_branch
      %62 = sbr.rel (0) target = $region21
    $region20: #{tpu_custom_call.1} parent=1 // pred_region
      %63 = dma.done [#allocation3], 256
    $region21: #{tpu_custom_call.1} parent=1 // pred_fallthru
      _
    // Predicated region
    $region22: #{tpu_custom_call.1} parent=1 // pred_check
      _
    $region23: #{tpu_custom_call.1} parent=1 // pred_check_branch
      %65 = sbr.rel (0) target = $region25
    $region24: #{tpu_custom_call.1} parent=1 // pred_region
      %66 = dma.done [#allocation6], 256
    $region25: #{tpu_custom_call.1} parent=1 // pred_fallthru
      _
    // Predicated region
    $region26: #{tpu_custom_call.1} parent=1 // pred_check
      _
    $region27: #{tpu_custom_call.1} parent=1 // pred_check_branch
      %68 = sbr.rel (0) target = $region29
    $region28: #{tpu_custom_call.1} parent=1 // pred_region
      %69 = dma.done [#allocation6], 256
    $region29: #{tpu_custom_call.1} parent=1 // pred_fallthru
      _
    // Predicated region
    $region30: #{tpu_custom_call.1} parent=1 // pred_check
      _
    $region31: #{tpu_custom_call.1} parent=1 // pred_check_branch
      %71 = sbr.rel (0) target = $region33
    $region32: #{tpu_custom_call.1} parent=1 // pred_region
      %72 = dma.done [#allocation9], 2048
    $region33: #{tpu_custom_call.1} parent=1 // pred_fallthru
      _
    %v73 = vld [vmem:[#allocation2] sm:$0xff]
    %v74 = vld [vmem:[#allocation2 + $0x8] sm:$0xff]
    %v75 = vld [vmem:[#allocation5] sm:$0xff]
    %v76 = vld [vmem:[#allocation5 + $0x8] sm:$0xff]
    %v77 = vsub.f32 %v73, %v75
    %v78 = vsub.f32 %v74, %v76
    %v79 = vld [vmem:[#allocation7] sm:$0xff]
    %v80 = vld [vmem:[#allocation7 + $0x8] sm:$0xff]
    %vm81 = vcmask 130048
    %v83 = vsel %vm81, %v79, 0
    %v86 = vsel %vm81, %v80, 0
    %88 = vmatprep.subr.mxu0 0.0
    %89 = vmatpush1.msra.mxu0 %v77
    %90 = vmatprep.subr.mxu0 0.0
    %91 = vmatpush1.msra.mxu0 %v78
    %92 = vmatprep.subr.mxu0 0.0
    %93 = vmatpush1.msra.mxu0 0.0
    %94 = vmatprep.subr.mxu0 0.0
    %95 = vmatpush1.msra.mxu0 0.0
    %96 = vmatprep.subr.mxu0 0.0
    %97 = vmatpush1.msra.mxu0 0.0
    %98 = vmatprep.subr.mxu0 0.0
    %99 = vmatpush1.msra.mxu0 0.0
    %100 = vmatprep.subr.mxu0 0.0
    %101 = vmatpush1.msra.mxu0 0.0
    %102 = vmatprep.subr.mxu0 0.0
    %103 = vmatpush1.msra.mxu0 0.0
    %104 = vmatprep.subr.mxu0 0.0
    %105 = vmatpush1.msra.mxu0 0.0
    %106 = vmatprep.subr.mxu0 0.0
    %107 = vmatpush1.msra.mxu0 0.0
    %108 = vmatprep.subr.mxu0 0.0
    %109 = vmatpush1.msra.mxu0 0.0
    %110 = vmatprep.subr.mxu0 0.0
    %111 = vmatpush1.msra.mxu0 0.0
    %112 = vmatprep.subr.mxu0 0.0
    %113 = vmatpush1.msra.mxu0 0.0
    %114 = vmatprep.subr.mxu0 0.0
    %115 = vmatpush1.msra.mxu0 0.0
    %116 = vmatprep.subr.mxu0 0.0
    %117 = vmatpush1.msra.mxu0 0.0
    %118 = vmatprep.subr.mxu0 0.0
    %119 = vmatpush1.msra.mxu0 0.0
    %120 = vmatprep.subr.mxu0 0.0
    %121 = vmatpush1.msra.mxu0 0.0
    %122 = vmatprep.subr.mxu0 0.0
    %123 = vmatpush1.msra.mxu0 0.0
    %124 = vmatprep.subr.mxu0 0.0
    %125 = vmatpush1.msra.mxu0 0.0
    %126 = vmatprep.subr.mxu0 0.0
    %127 = vmatpush1.msra.mxu0 0.0
    %128 = vmatprep.subr.mxu0 0.0
    %129 = vmatpush1.msra.mxu0 0.0
    %130 = vmatprep.subr.mxu0 0.0
    %131 = vmatpush1.msra.mxu0 0.0
    %132 = vmatprep.subr.mxu0 0.0
    %133 = vmatpush1.msra.mxu0 0.0
    %134 = vmatprep.subr.mxu0 0.0
    %135 = vmatpush1.msra.mxu0 0.0
    %136 = vmatprep.subr.mxu0 0.0
    %137 = vmatpush1.msra.mxu0 0.0
    %138 = vmatprep.subr.mxu0 0.0
    %139 = vmatpush1.msra.mxu0 0.0
    %140 = vmatprep.subr.mxu0 0.0
    %141 = vmatpush1.msra.mxu0 0.0
    %142 = vmatprep.subr.mxu0 0.0
    %143 = vmatpush1.msra.mxu0 0.0
    %144 = vmatprep.subr.mxu0 0.0
    %145 = vmatpush1.msra.mxu0 0.0
    %146 = vmatprep.subr.mxu0 0.0
    %147 = vmatpush1.msra.mxu0 0.0
    %148 = vmatprep.subr.mxu0 0.0
    %149 = vmatpush1.msra.mxu0 0.0
    %150 = vmatprep.subr.mxu0 0.0
    %151 = vmatpush1.msra.mxu0 0.0
    %152 = vmatprep.mubr.f32.mxu0 0.0
    %153 = vmatmul.mubr.f32.gmra.mrb[0].mxu0 %v83
    %v154 = vpop.f32.mrb[0].mxu0
    %v155 = vadd.f32 0.0, %v154
    %v156 = vpop.f32.mrb[0].mxu0
    %157 = vmatprep.mubr.f32.mxu0 0.0
    %158 = vmatmul.mubr.f32.gmra.mrb[0].mxu0 %v86
    %v159 = vpop.f32.mrb[0].mxu0
    %v160 = vadd.f32 0.0, %v159
    %v161 = vpop.f32.mrb[0].mxu0
    %162 = vdwg.mxu0
    %v163 = vld [vmem:[#allocation8] sm:$0xff]
    %v164 = vld [vmem:[#allocation8 + $0x8] sm:$0xff]
    %v165 = vld [vmem:[#allocation8 + $0x10] sm:$0xff]
    %v166 = vld [vmem:[#allocation8 + $0x18] sm:$0xff]
    %v167 = vld [vmem:[#allocation8 + $0x20] sm:$0xff]
    %v168 = vld [vmem:[#allocation8 + $0x28] sm:$0xff]
    %v169 = vld [vmem:[#allocation8 + $0x30] sm:$0xff]
    %v170 = vld [vmem:[#allocation8 + $0x38] sm:$0xff]
    %v171 = vld [vmem:[#allocation8 + $0x40] sm:$0xff]
    %v172 = vld [vmem:[#allocation8 + $0x48] sm:$0xff]
    %v173 = vld [vmem:[#allocation8 + $0x50] sm:$0xff]
    %v174 = vld [vmem:[#allocation8 + $0x58] sm:$0xff]
    %v175 = vld [vmem:[#allocation8 + $0x60] sm:$0xff]
    %v176 = vld [vmem:[#allocation8 + $0x68] sm:$0xff]
    %v177 = vld [vmem:[#allocation8 + $0x70] sm:$0xff]
    %v178 = vld [vmem:[#allocation8 + $0x78] sm:$0xff]
    %179 = vmatprep.subr.mxu0 0.0
    %180 = vmatpush1.msra.mxu0 %v163
    %181 = vmatprep.subr.mxu0 0.0
    %182 = vmatpush1.msra.mxu0 %v164
    %183 = vmatprep.subr.mxu0 0.0
    %184 = vmatpush1.msra.mxu0 %v165
    %185 = vmatprep.subr.mxu0 0.0
    %186 = vmatpush1.msra.mxu0 %v166
    %187 = vmatprep.subr.mxu0 0.0
    %188 = vmatpush1.msra.mxu0 %v167
    %189 = vmatprep.subr.mxu0 0.0
    %190 = vmatpush1.msra.mxu0 %v168
    %191 = vmatprep.subr.mxu0 0.0
    %192 = vmatpush1.msra.mxu0 %v169
    %193 = vmatprep.subr.mxu0 0.0
    %194 = vmatpush1.msra.mxu0 %v170
    %195 = vmatprep.subr.mxu0 0.0
    %196 = vmatpush1.msra.mxu0 %v171
    %197 = vmatprep.subr.mxu0 0.0
    %198 = vmatpush1.msra.mxu0 %v172
    %199 = vmatprep.subr.mxu0 0.0
    %200 = vmatpush1.msra.mxu0 %v173
    %201 = vmatprep.subr.mxu0 0.0
    %202 = vmatpush1.msra.mxu0 %v174
    %203 = vmatprep.subr.mxu0 0.0
    %204 = vmatpush1.msra.mxu0 %v175
    %205 = vmatprep.subr.mxu0 0.0
    %206 = vmatpush1.msra.mxu0 %v176
    %207 = vmatprep.subr.mxu0 0.0
    %208 = vmatpush1.msra.mxu0 %v177
    %209 = vmatprep.subr.mxu0 0.0
    %210 = vmatpush1.msra.mxu0 %v178
    %211 = vmatprep.subr.mxu0 0.0
    %212 = vmatpush1.msra.mxu0 0.0
    %213 = vmatprep.subr.mxu0 0.0
    %214 = vmatpush1.msra.mxu0 0.0
    %215 = vmatprep.subr.mxu0 0.0
    %216 = vmatpush1.msra.mxu0 0.0
    %217 = vmatprep.subr.mxu0 0.0
    %218 = vmatpush1.msra.mxu0 0.0
    %219 = vmatprep.subr.mxu0 0.0
    %220 = vmatpush1.msra.mxu0 0.0
    %221 = vmatprep.subr.mxu0 0.0
    %222 = vmatpush1.msra.mxu0 0.0
    %223 = vmatprep.subr.mxu0 0.0
    %224 = vmatpush1.msra.mxu0 0.0
    %225 = vmatprep.subr.mxu0 0.0
    %226 = vmatpush1.msra.mxu0 0.0
    %227 = vmatprep.subr.mxu0 0.0
    %228 = vmatpush1.msra.mxu0 0.0
    %229 = vmatprep.subr.mxu0 0.0
    %230 = vmatpush1.msra.mxu0 0.0
    %231 = vmatprep.subr.mxu0 0.0
    %232 = vmatpush1.msra.mxu0 0.0
    %233 = vmatprep.subr.mxu0 0.0
    %234 = vmatpush1.msra.mxu0 0.0
    %235 = vmatprep.subr.mxu0 0.0
    %236 = vmatpush1.msra.mxu0 0.0
    %237 = vmatprep.subr.mxu0 0.0
    %238 = vmatpush1.msra.mxu0 0.0
    %239 = vmatprep.subr.mxu0 0.0
    %240 = vmatpush1.msra.mxu0 0.0
    %241 = vmatprep.subr.mxu0 0.0
    %242 = vmatpush1.msra.mxu0 0.0
    %243 = vmatprep.mubr.f32.mxu0 0.0
    %244 = vmatmul.mubr.f32.gmra.mrb[0].mxu0 %v155
    %v245 = vpop.f32.mrb[0].mxu0
    %v246 = vadd.f32 0.0, %v245
    %v247 = vpop.f32.mrb[0].mxu0
    %248 = vmatprep.mubr.f32.mxu0 0.0
    %249 = vmatmul.mubr.f32.gmra.mrb[0].mxu0 %v160
    %v250 = vpop.f32.mrb[0].mxu0
    %v251 = vadd.f32 0.0, %v250
    %v252 = vpop.f32.mrb[0].mxu0
    %253 = vdwg.mxu0
    %v254 = vsub.f32 %v77, %v246
    %v255 = vsub.f32 %v78, %v251
    %v256 = vand.u32 2147483647, %v254
    %v257 = vand.u32 2147483647, %v255
    %v258 = vadd.f32 %v256, %v257
    %259 = vst [vmem:[#allocation10] sm:$0xff] %v258
    // Predicated region
    $region34: #{tpu_custom_call.1} parent=1 // pred_check
      _
    $region35: #{tpu_custom_call.1} parent=1 // pred_check_branch
      %261 = sbr.rel (0) target = $region37
    $region36: #{tpu_custom_call.1} parent=1 // pred_region
      %s263 = ssub.s32 128, 128
      %264 = vsyncadd [#allocation4], %s263
      %s266 = sshll.u32 [#allocation10], 4
      %s267 = int_to_ptr.vmem [resolvable:$true] %s266
      %269 = dma.vmem_to_hbm [thread:$0]  %s267, 128, %s4, [#allocation4]
    $region37: #{tpu_custom_call.1} parent=1 // pred_fallthru
      _
    // Predicated region
    $region38: #{tpu_custom_call.1} parent=1 // pred_check
      _
    $region39: #{tpu_custom_call.1} parent=1 // pred_check_branch
      %271 = sbr.rel (0) target = $region41
    $region40: #{tpu_custom_call.1} parent=1 // pred_region
      %272 = dma.done [#allocation4], 128
    $region41: #{tpu_custom_call.1} parent=1 // pred_fallthru
      _
    %273 = vsyncpa [#allocation3], 1
    %274 = vsyncpa [#allocation6], 1
    %275 = vsyncpa [#allocation9], 1
    %276 = vsyncpa [#allocation4], 1

</llo_original>
